<compile_context>
chip_gen: v7x
topology: tpu7x:2x2x1
jax: 0.10.0
libtpu: 0.0.40
codegen_flags: <defaults>
</compile_context>

<pallas_src>
import jax
import jax.numpy as jnp
from jax import lax
from jax.experimental import pallas as pl
from jax.experimental.pallas import tpu as pltpu
from typing import NamedTuple

EPS = 1e-8          # matches cosine_distance_torch default
_LANE = 128
_SUBLANE = 8
_VMEM_BUDGET = 44 * 1024 * 1024   # double-buffered working-set cap (fits v7x 64 MiB/TC)
_VMEM_LIMIT = 48 * 1024 * 1024    # scoped-VMEM limit (v5e default is 16 MiB -> raise it)


def _round_up(x, m):
    return ((x + m - 1) // m) * m


def _shrink(v, unit):
    """Halve v, snapped down to a multiple of `unit` (never below `unit`)."""
    return max(unit, (v // 2) // unit * unit)


# ----------------------------------------------------------------------------
# Kernel: pairwise cosine SIMILARITY   sim = (x @ t.T) * inv|x| * inv|t|
# ----------------------------------------------------------------------------
def _make_cosine_sim_kernel(single_k: bool):
    """One (tm, tn) output tile; K (feature) axis is the (last) reduction grid axis.

    The f32 output block is resident across the k axis, so partial dots accumulate
    straight into o_ref (no VMEM accumulator scratch)."""

    def _partial_dot(x_ref, t_ref):
        # Contract the last dim of BOTH operands: the MXU consumes the RHS transposed,
        # so there is no in-kernel t.T (XLU traffic); bf16 operands, f32 accumulation.
        return lax.dot_general(
            x_ref[...], t_ref[...],
            dimension_numbers=(((1,), (1,)), ((), ())),
            preferred_element_type=jnp.float32)

    if single_k:
        def kernel(x_ref, t_ref, ixn_ref, itn_ref, o_ref):
            # D fits in one k tile: single fused write, no init/finalize dance.
            o_ref[...] = _partial_dot(x_ref, t_ref) * ixn_ref[...] * itn_ref[...]
        return kernel

    def kernel(x_ref, t_ref, ixn_ref, itn_ref, o_ref):
        k = pl.program_id(2)
        part = _partial_dot(x_ref, t_ref)

        @pl.when(k == 0)
        def _init():
            o_ref[...] = part

        @pl.when(k > 0)
        def _accum():
            o_ref[...] += part

        @pl.when(k == pl.num_programs(2) - 1)
        def _finalize():
            # Two broadcast multiplies with precomputed inverse norms; no per-element
            # divide / sqrt / max inside the tile loop.
            o_ref[...] *= ixn_ref[...] * itn_ref[...]

    return kernel


# ----------------------------------------------------------------------------
# Train-database preprocessing (static across forward calls -> cache it)
# ----------------------------------------------------------------------------
class TrainDB(NamedTuple):
    """Preprocessed train database. Build once with prepare_train_db() and reuse."""
    t_pad: jax.Array     # [N_pad, D_pad], compute dtype (bf16), zero padded
    inv_tn: jax.Array    # [1, N_pad] f32 inverse norms; exactly 0 for padded rows
    n: int               # original number of train vectors
    d: int               # original feature dim
    tn: int              # train-row tile (multiple of 128)
    tk: int              # feature (contraction) tile (multiple of 128)


def _select_db_tiles(N, D, in_bytes, *, tm_max=256, tn_max=2048, tk_max=2048):
    """Pick (tn, tk) as big as the VMEM budget allows (amortizes per-grid-step overhead)."""
    tm = _round_up(tm_max, _SUBLANE)               # worst-case query tile for the budget
    tn = min(tn_max, _round_up(N, _LANE))
    tk = min(tk_max, _round_up(D, _LANE))

    def vmem(tn_, tk_):
        # double-buffered bf16 x / t tiles + double-buffered f32 output tile + norm strips
        return 2 * (tm * tk_ * in_bytes + tn_ * tk_ * in_bytes
                    + tm * tn_ * 4 + (tm + tn_) * 4)

    while vmem(tn, tk) > _VMEM_BUDGET and (tn > _LANE or tk > _LANE):
        if tn >= tk and tn > _LANE:
            tn = _shrink(tn, _LANE)
        else:
            tk = _shrink(tk, _LANE)
    return tn, tk


def prepare_train_db(train_vectors, *, eps=EPS, compute_dtype=jnp.bfloat16,
                     tn_max=2048, tk_max=2048):
    """Cast / pad / normalize the train database ONCE; reuse the result every call.

    Doing this per call would re-read (and re-write) the full N x D database from HBM
    several times per forward -- more traffic than the matmul itself when M is small.
    """
    t = jnp.asarray(train_vectors)
    N, D = t.shape
    in_bytes = jnp.dtype(compute_dtype).itemsize
    tn, tk = _select_db_tiles(N, D, in_bytes, tn_max=tn_max, tk_max=tk_max)
    N_pad = _round_up(N, tn)
    D_pad = _round_up(D, tk)

    # Inverse norms in f32 (rsqrt of the clamped squared norm), accumulated in f32
    # directly from the native-dtype rows -- no materialized f32 copy of the DB.
    sq = jnp.einsum("nd,nd->n", t, t, preferred_element_type=jnp.float32)
    inv = lax.rsqrt(jnp.maximum(sq, jnp.float32(eps) ** 2))
    if N_pad > N:
        inv = jnp.pad(inv, (0, N_pad - N))      # padded rows -> inv norm 0 -> sim exactly 0
    inv_tn = inv.reshape(1, N_pad)

    t_c = t.astype(compute_dtype)               # bf16 for the MXU (halves the HBM stream)
    if N_pad > N or D_pad > D:
        t_c = jnp.pad(t_c, ((0, N_pad - N), (0, D_pad - D)))

    return TrainDB(t_pad=t_c, inv_tn=inv_tn, n=N, d=D, tn=tn, tk=tk)


# ----------------------------------------------------------------------------
# Pallas wrapper
# ----------------------------------------------------------------------------
def cosine_similarity_pallas(x, train_db, *, eps=EPS, tm_max=256,
                             compute_dtype=jnp.bfloat16):
    """x: [M, D] queries vs. a prepared TrainDB -> [M, N] cosine similarities (f32).

    cosine distance = 1 - similarity (compute it in the caller only if needed).
    Note: eps clamping is applied per-norm (rsqrt of the clamped squared norm) rather
    than on the product of norms as in cosine_distance_torch; results differ only for
    near-zero vectors (where the dot is ~0 anyway).

    TODO(synk): large-M regime -- with this grid the train DB is re-streamed
    ceil(M/tm) times and the dense [M, N] sim matrix is written back and re-read by
    top_k. Fine for the skinny query batches this metric sees; a streaming in-kernel
    top-k would be needed before using it with very large M.
    """
    if not isinstance(train_db, TrainDB):
        train_db = prepare_train_db(train_db, eps=eps, compute_dtype=compute_dtype)

    M, D = x.shape
    assert D == train_db.d, f"feature dim mismatch: {D} vs {train_db.d}"
    N = train_db.n
    tn, tk = train_db.tn, train_db.tk
    N_pad, D_pad = train_db.t_pad.shape

    tm = min(_round_up(tm_max, _SUBLANE), _round_up(M, _SUBLANE))
    M_pad = _round_up(M, tm)

    # Query-side inverse norms (f32 accumulation on the native dtype; padded rows -> 0).
    sqx = jnp.einsum("md,md->m", x, x, preferred_element_type=jnp.float32)
    inv_x = lax.rsqrt(jnp.maximum(sqx, jnp.float32(eps) ** 2))
    if M_pad > M:
        inv_x = jnp.pad(inv_x, (0, M_pad - M))
    inv_xn = inv_x.reshape(M_pad, 1)

    xq = x.astype(compute_dtype)
    if M_pad > M or D_pad > D:
        xq = jnp.pad(xq, ((0, M_pad - M), (0, D_pad - D)))

    n_k = D_pad // tk
    # N axis first: on v7x the 2-TC megacore split lands on an axis with many programs
    # (the train-DB stream), not a size-1 query axis. Reduction axis (k) stays last.
    grid = (N_pad // tn, M_pad // tm, n_k)

    sim_pad = pl.pallas_call(
        _make_cosine_sim_kernel(single_k=(n_k == 1)),
        out_shape=jax.ShapeDtypeStruct((M_pad, N_pad), jnp.float32),
        grid_spec=pltpu.PrefetchScalarGridSpec(
            num_scalar_prefetch=0,
            grid=grid,
            in_specs=[
                pl.BlockSpec((tm, tk), lambda j, i, k: (i, k)),   # x tile (bf16)
                pl.BlockSpec((tn, tk), lambda j, i, k: (j, k)),   # t tile (bf16, contracted on last dim)
                pl.BlockSpec((tm, 1), lambda j, i, k: (i, 0)),    # 1/|x|  (f32)
                pl.BlockSpec((1, tn), lambda j, i, k: (0, j)),    # 1/|t|  (f32)
            ],
            out_specs=pl.BlockSpec((tm, tn), lambda j, i, k: (i, j)),
        ),
        compiler_params=pltpu.CompilerParams(
            dimension_semantics=("parallel", "parallel", "arbitrary"),
            vmem_limit_bytes=_VMEM_LIMIT),
    )(xq, train_db.t_pad, inv_xn, train_db.inv_tn)

    return sim_pad[:M, :N]


# ----------------------------------------------------------------------------
# Forward wrapper (device-computable part of VotingSystemMetric.forward)
# ----------------------------------------------------------------------------
def voting_system_forward(vectors, label_logits, train_db, train_labels,
                          topn=10, decision_function="sigmoid",
                          return_dists=False):
    """`train_db` may be a raw [N, D] array or (preferably) a cached prepare_train_db()
    result so the database preprocessing is not repeated every call."""
    if not isinstance(train_db, TrainDB):
        train_db = prepare_train_db(train_db)

    # cosine similarity (Pallas kernel -- the hot path). Largest similarity ==
    # smallest cosine distance, so top_k consumes it directly (no "-dists" pass).
    sim = cosine_similarity_pallas(vectors, train_db)

    # decision function on the model's label output
    if decision_function == "sigmoid":
        y_pred = (label_logits > 0).astype(jnp.int32)
    elif decision_function == "softmax":
        y_pred = jnp.argmax(label_logits, axis=-1)
    else:
        raise NotImplementedError(decision_function)

    # top-10 nearest neighbours (smallest distance == largest similarity)
    # TODO(synk): argpartition/argsort has no clean Pallas equivalent; use lax.top_k in glue.
    _, best_idx = jax.lax.top_k(sim, topn)                       # [M, topn]

    # neighbour label voting: a few KB of data, so this stays plain JAX
    # (a pallas_call here costs more in launch/DMA overhead than the compute).
    neighbor_labels = jnp.take(train_labels, best_idx, axis=0)   # [M, topn, C]
    neighbors_positive = (jnp.mean(neighbor_labels, axis=1) > 0.5).astype(jnp.int32)

    # TODO(synk): classification_report + task-tree / class-name string voting is host-side
    # python with no Pallas equivalent; the numeric outputs above feed that stage.
    if return_dists:
        return 1.0 - sim, y_pred, neighbors_positive
    return sim, y_pred, neighbors_positive


# ----------------------------------------------------------------------------
# References (pure JAX) for correctness checking
# ----------------------------------------------------------------------------
def cosine_distance_ref(x, t, eps=EPS):
    """Full-f32 reference matching cosine_distance_torch."""
    w1 = jnp.linalg.norm(x, axis=1, keepdims=True)
    w2 = jnp.linalg.norm(t, axis=1, keepdims=True)
    return 1.0 - (x @ t.T) / jnp.maximum(w1 * w2.T, eps)


def cosine_similarity_ref_quantized(x, t, eps=EPS, compute_dtype=jnp.bfloat16):
    """Reference that uses the same bf16 operands / f32 norms as the Pallas kernel."""
    dot = jnp.dot(x.astype(compute_dtype), t.astype(compute_dtype).T,
                  preferred_element_type=jnp.float32)
    inv_x = lax.rsqrt(jnp.maximum(
        jnp.einsum("md,md->m", x, x, preferred_element_type=jnp.float32),
        jnp.float32(eps) ** 2))[:, None]
    inv_t = lax.rsqrt(jnp.maximum(
        jnp.einsum("nd,nd->n", t, t, preferred_element_type=jnp.float32),
        jnp.float32(eps) ** 2))[None, :]
    return dot * inv_x * inv_t


if __name__ == "__main__":
    key = jax.random.PRNGKey(0)
    k1, k2, k3, k4 = jax.random.split(key, 4)

    M = 8        # number of validation samples in the batch
    N = 1024     # number of train vectors (database)
    D = 256      # embedding dim
    C = 16       # number of "all_classes" (multi-hot label width)
    TOPN = 10

    vectors       = jax.random.normal(k1, (M, D), dtype=jnp.float32)
    train_vectors = jax.random.normal(k2, (N, D), dtype=jnp.float32)
    train_labels  = (jax.random.uniform(k3, (N, C)) > 0.7).astype(jnp.float32)
    label_logits  = jax.random.normal(k4, (M, C), dtype=jnp.float32)

    # Preprocess the (static) train database once; reuse it across forward calls.
    train_db = prepare_train_db(train_vectors)

    sim, y_pred, votes = voting_system_forward(
        vectors, label_logits, train_db, train_labels, topn=TOPN)
    jax.block_until_ready((sim, y_pred, votes))

    # --- verify vs. the full-f32 reference (loose tol: the kernel feeds the MXU bf16) ---
    dists = 1.0 - sim
    dists_ref = cosine_distance_ref(vectors, train_vectors)
    max_err = jnp.max(jnp.abs(dists - dists_ref))
    assert jnp.allclose(dists, dists_ref, atol=1e-2, rtol=0.0), \
        f"cosine distance mismatch, max err {max_err}"

    # --- verify the quantity that actually feeds voting against a bf16-consistent ref ---
    sim_qref = cosine_similarity_ref_quantized(vectors, train_vectors)
    assert jnp.allclose(sim, sim_qref, atol=1e-3, rtol=0.0), \
        f"bf16 similarity mismatch, max err {jnp.max(jnp.abs(sim - sim_qref))}"
    _, best_idx_ref = jax.lax.top_k(sim_qref, TOPN)
    votes_ref = (jnp.mean(jnp.take(train_labels, best_idx_ref, axis=0), axis=1) > 0.5
                 ).astype(jnp.int32)
    assert jnp.array_equal(votes, votes_ref), "neighbour vote mismatch"

    y_pred_ref = (label_logits > 0).astype(jnp.int32)
    assert jnp.array_equal(y_pred, y_pred_ref), "decision function mismatch"

    print("KERNEL_OK")
</pallas_src>

<mosaic_0001>
module attributes {stable_mosaic.version = 11 : i64} {
  func.func @kernel(%arg0: i32, %arg1: i32, %arg2: i32, %arg3: memref<8x256xbf16, #tpu.memory_space<vmem>>, %arg4: memref<1024x256xbf16, #tpu.memory_space<vmem>>, %arg5: memref<8x1xf32, #tpu.memory_space<vmem>>, %arg6: memref<1x1024xf32, #tpu.memory_space<vmem>>, %arg7: memref<8x1024xf32, #tpu.memory_space<vmem>>) attributes {dimension_semantics = [#tpu.dimension_semantics<parallel>, #tpu.dimension_semantics<parallel>, #tpu.dimension_semantics<arbitrary>], iteration_bounds = array<i64: 1, 1, 1>, scalar_prefetch = 0 : i64, scratch_operands = 0 : i64, tpu.core_type = #tpu.core_type<tc>, window_params = [{transform_indices = @transform_0, window_bounds = array<i64: 8, 256>}, {transform_indices = @transform_1, window_bounds = array<i64: 1024, 256>}, {transform_indices = @transform_2, window_bounds = array<i64: 8, 1>}, {transform_indices = @transform_3, window_bounds = array<i64: 1, 1024>}, {transform_indices = @transform_4, window_bounds = array<i64: 8, 1024>}]} {
    %c0 = arith.constant 0 : index
    %c0_0 = arith.constant 0 : index
    %0 = vector.load %arg3[%c0, %c0_0] : memref<8x256xbf16, #tpu.memory_space<vmem>>, vector<8x256xbf16>
    %c0_1 = arith.constant 0 : index
    %c0_2 = arith.constant 0 : index
    %1 = vector.load %arg4[%c0_1, %c0_2] : memref<1024x256xbf16, #tpu.memory_space<vmem>>, vector<1024x256xbf16>
    %cst = arith.constant dense<0.000000e+00> : vector<8x1024xf32>
    %2 = tpu.matmul %0, %1, %cst {dimension_numbers = #tpu.dot_dimension_numbers<[1], [1], [0], [0], [0, 0, 1, 0], [], []>} : vector<8x256xbf16>, vector<1024x256xbf16>, vector<8x1024xf32> -> vector<8x1024xf32>
    %c0_3 = arith.constant 0 : index
    %c0_4 = arith.constant 0 : index
    %3 = vector.load %arg5[%c0_3, %c0_4] : memref<8x1xf32, #tpu.memory_space<vmem>>, vector<8x1xf32>
    %4 = vector.broadcast %3 : vector<8x1xf32> to vector<8x1024xf32>
    %5 = arith.mulf %2, %4 : vector<8x1024xf32>
    %c0_5 = arith.constant 0 : index
    %c0_6 = arith.constant 0 : index
    %6 = vector.load %arg6[%c0_5, %c0_6] : memref<1x1024xf32, #tpu.memory_space<vmem>>, vector<1x1024xf32>
    %7 = vector.broadcast %6 : vector<1x1024xf32> to vector<8x1024xf32>
    %8 = arith.mulf %5, %7 : vector<8x1024xf32>
    %c0_7 = arith.constant 0 : index
    %c0_8 = arith.constant 0 : index
    %9 = vector.load %arg7[%c0_7, %c0_8] : memref<8x1024xf32, #tpu.memory_space<vmem>>, vector<8x1024xf32>
    tpu.vector_store %arg7[%c0_7, %c0_8], %8 {strides = array<i32>} : memref<8x1024xf32, #tpu.memory_space<vmem>>, vector<8x1024xf32>,
    return
  }
  func.func @transform_0(%arg0: i32, %arg1: i32, %arg2: i32) -> (i32, i32) {
    %c0_i32 = arith.constant 0 : i32
    return %arg1, %arg2 : i32, i32
  }
  func.func @transform_1(%arg0: i32, %arg1: i32, %arg2: i32) -> (i32, i32) {
    %c0_i32 = arith.constant 0 : i32
    return %arg0, %arg2 : i32, i32
  }
  func.func @transform_2(%arg0: i32, %arg1: i32, %arg2: i32) -> (i32, i32) {
    %c0_i32 = arith.constant 0 : i32
    %c0_i32_0 = arith.constant 0 : i32
    return %arg1, %c0_i32 : i32, i32
  }
  func.func @transform_3(%arg0: i32, %arg1: i32, %arg2: i32) -> (i32, i32) {
    %c0_i32 = arith.constant 0 : i32
    %c0_i32_0 = arith.constant 0 : i32
    return %c0_i32, %arg0 : i32, i32
  }
  func.func @transform_4(%arg0: i32, %arg1: i32, %arg2: i32) -> (i32, i32) {
    %c0_i32 = arith.constant 0 : i32
    return %arg1, %arg0 : i32, i32
  }
}

</mosaic_0001>

<llo_original>
// kernel: tpu_custom_call.1
$region0: #{tpu_custom_call.1}
  #allocation0 [shape = 'u32[]', space=smem, size = 0x4, offset = 0x4, fixed_abs, tag = 'smem constant byte address 0x4 - core index']
  #allocation1 [shape = 'u32[144,128]{1,0:T(1,128)}', space=vmem, size = 0x12000, scoped, tag = 'internal scratch']
  %s0 = inlined_call_operand.vmem [shape: bf16[8,256], index: 0, kind: input, shape index: {}]
  %s1 = inlined_call_operand.hbm [shape: bf16[1024,256], index: 1, kind: input, shape index: {}]
  %s2 = inlined_call_operand.vmem [shape: f32[8,1], index: 2, kind: input, shape index: {}]
  %s3 = inlined_call_operand.vmem [shape: f32[1,1024], index: 3, kind: input, shape index: {}]
  %s4 = inlined_call_operand.hbm [shape: f32[8,1024], index: 4, kind: output, shape index: {}]
  %s5 = sld [smem:[#allocation0]]
  $region30: #{tpu_custom_call.1} parent=0
    _
  %s7 = ssub.s32 1, %s5
  %s8 = scalar_select 0, %s7, %s5
  $region1: #{tpu_custom_call.1} parent=0
    #allocation2 [shape = 'u8[524288]{0}', space=vmem, size = 0x80000, scoped, tag = 'input window, operand 1, single buffered']
    #allocation3 [shape = 's32[1]{0}', space=sflag, size = 0x4, scoped, tag = 'scoped memory for tpu_custom_call.1']
    #allocation4 [shape = 's32[1]{0}', space=sflag, size = 0x4, scoped, tag = 'scoped memory for tpu_custom_call.1']
    #allocation5 [shape = 'u8[32768]{0}', space=vmem, size = 0x8000, scoped, tag = 'output window, operand 0, single buffered']
    %9 = vsyncpa [#allocation3], 0
    %10 = vsyncpa [#allocation4], 0
    // Predicated region
    $region2: #{tpu_custom_call.1} parent=1 // pred_check
      _
    $region3: #{tpu_custom_call.1} parent=1 // pred_check_branch
      %12 = sbr.rel (0) target = $region5
    $region4: #{tpu_custom_call.1} parent=1 // pred_region
      _
    $region5: #{tpu_custom_call.1} parent=1 // pred_fallthru
      _
    // Predicated region
    $region6: #{tpu_custom_call.1} parent=1 // pred_check
      _
    $region7: #{tpu_custom_call.1} parent=1 // pred_check_branch
      %14 = sbr.rel (0) target = $region9
    $region8: #{tpu_custom_call.1} parent=1 // pred_region
      %s16 = ssub.s32 16384, 16384
      %17 = vsyncadd [#allocation3], %s16
      %s18 = sshll.u32 [#allocation2], 4
      %s19 = int_to_ptr.vmem [resolvable:$true] %s18
      %24 = dma.hbm_to_vmem [thread:$0]  %s1, 16384, %s19, [#allocation3], 128, 128, 8
    $region9: #{tpu_custom_call.1} parent=1 // pred_fallthru
      _
    // Predicated region
    $region10: #{tpu_custom_call.1} parent=1 // pred_check
      _
    $region11: #{tpu_custom_call.1} parent=1 // pred_check_branch
      %26 = sbr.rel (0) target = $region13
    $region12: #{tpu_custom_call.1} parent=1 // pred_region
      _
    $region13: #{tpu_custom_call.1} parent=1 // pred_fallthru
      _
    // Predicated region
    $region14: #{tpu_custom_call.1} parent=1 // pred_check
      _
    $region15: #{tpu_custom_call.1} parent=1 // pred_check_branch
      %28 = sbr.rel (0) target = $region17
    $region16: #{tpu_custom_call.1} parent=1 // pred_region
      _
    $region17: #{tpu_custom_call.1} parent=1 // pred_fallthru
      _
    // Predicated region
    $region18: #{tpu_custom_call.1} parent=1 // pred_check
      _
    $region19: #{tpu_custom_call.1} parent=1 // pred_check_branch
      %30 = sbr.rel (0) target = $region21
    $region20: #{tpu_custom_call.1} parent=1 // pred_region
      %31 = dma.done [#allocation3], 16384
    $region21: #{tpu_custom_call.1} parent=1 // pred_fallthru
      _
    %v32 = vld [vmem:[%s0] sm:$0xff]
    %v33 = vld [vmem:[#allocation2] sm:$0xff]
    %v34 = vld [vmem:[#allocation2 + $0x8] sm:$0xff]
    %v35 = vld [vmem:[#allocation2 + $0x10] sm:$0xff]
    %v36 = vld [vmem:[#allocation2 + $0x18] sm:$0xff]
    %v37 = vld [vmem:[#allocation2 + $0x20] sm:$0xff]
    %v38 = vld [vmem:[#allocation2 + $0x28] sm:$0xff]
    %v39 = vld [vmem:[#allocation2 + $0x30] sm:$0xff]
    %v40 = vld [vmem:[#allocation2 + $0x38] sm:$0xff]
    %v41 = vld [vmem:[#allocation2 + $0x40] sm:$0xff]
    %v42 = vld [vmem:[#allocation2 + $0x48] sm:$0xff]
    %v43 = vld [vmem:[#allocation2 + $0x50] sm:$0xff]
    %v44 = vld [vmem:[#allocation2 + $0x58] sm:$0xff]
    %v45 = vld [vmem:[#allocation2 + $0x60] sm:$0xff]
    %v46 = vld [vmem:[#allocation2 + $0x68] sm:$0xff]
    %v47 = vld [vmem:[#allocation2 + $0x70] sm:$0xff]
    %v48 = vld [vmem:[#allocation2 + $0x78] sm:$0xff]
    %v49 = vld [vmem:[#allocation2 + $0x80] sm:$0xff]
    %v50 = vld [vmem:[#allocation2 + $0x88] sm:$0xff]
    %v51 = vld [vmem:[#allocation2 + $0x90] sm:$0xff]
    %v52 = vld [vmem:[#allocation2 + $0x98] sm:$0xff]
    %v53 = vld [vmem:[#allocation2 + $0xa0] sm:$0xff]
    %v54 = vld [vmem:[#allocation2 + $0xa8] sm:$0xff]
    %v55 = vld [vmem:[#allocation2 + $0xb0] sm:$0xff]
    %v56 = vld [vmem:[#allocation2 + $0xb8] sm:$0xff]
    %v57 = vld [vmem:[#allocation2 + $0xc0] sm:$0xff]
    %v58 = vld [vmem:[#allocation2 + $0xc8] sm:$0xff]
    %v59 = vld [vmem:[#allocation2 + $0xd0] sm:$0xff]
    %v60 = vld [vmem:[#allocation2 + $0xd8] sm:$0xff]
    %v61 = vld [vmem:[#allocation2 + $0xe0] sm:$0xff]
    %v62 = vld [vmem:[#allocation2 + $0xe8] sm:$0xff]
    %v63 = vld [vmem:[#allocation2 + $0xf0] sm:$0xff]
    %v64 = vld [vmem:[#allocation2 + $0xf8] sm:$0xff]
    %v65 = vld [vmem:[#allocation2 + $0x100] sm:$0xff]
    %v66 = vld [vmem:[#allocation2 + $0x108] sm:$0xff]
    %v67 = vld [vmem:[#allocation2 + $0x110] sm:$0xff]
    %v68 = vld [vmem:[#allocation2 + $0x118] sm:$0xff]
    %v69 = vld [vmem:[#allocation2 + $0x120] sm:$0xff]
    %v70 = vld [vmem:[#allocation2 + $0x128] sm:$0xff]
    %v71 = vld [vmem:[#allocation2 + $0x130] sm:$0xff]
    %v72 = vld [vmem:[#allocation2 + $0x138] sm:$0xff]
    %v73 = vld [vmem:[#allocation2 + $0x140] sm:$0xff]
    %v74 = vld [vmem:[#allocation2 + $0x148] sm:$0xff]
    %v75 = vld [vmem:[#allocation2 + $0x150] sm:$0xff]
    %v76 = vld [vmem:[#allocation2 + $0x158] sm:$0xff]
    %v77 = vld [vmem:[#allocation2 + $0x160] sm:$0xff]
    %v78 = vld [vmem:[#allocation2 + $0x168] sm:$0xff]
    %v79 = vld [vmem:[#allocation2 + $0x170] sm:$0xff]
    %v80 = vld [vmem:[#allocation2 + $0x178] sm:$0xff]
    %v81 = vld [vmem:[#allocation2 + $0x180] sm:$0xff]
    %v82 = vld [vmem:[#allocation2 + $0x188] sm:$0xff]
    %v83 = vld [vmem:[#allocation2 + $0x190] sm:$0xff]
    %v84 = vld [vmem:[#allocation2 + $0x198] sm:$0xff]
    %v85 = vld [vmem:[#allocation2 + $0x1a0] sm:$0xff]
    %v86 = vld [vmem:[#allocation2 + $0x1a8] sm:$0xff]
    %v87 = vld [vmem:[#allocation2 + $0x1b0] sm:$0xff]
    %v88 = vld [vmem:[#allocation2 + $0x1b8] sm:$0xff]
    %v89 = vld [vmem:[#allocation2 + $0x1c0] sm:$0xff]
    %v90 = vld [vmem:[#allocation2 + $0x1c8] sm:$0xff]
    %v91 = vld [vmem:[#allocation2 + $0x1d0] sm:$0xff]
    %v92 = vld [vmem:[#allocation2 + $0x1d8] sm:$0xff]
    %v93 = vld [vmem:[#allocation2 + $0x1e0] sm:$0xff]
    %v94 = vld [vmem:[#allocation2 + $0x1e8] sm:$0xff]
    %v95 = vld [vmem:[#allocation2 + $0x1f0] sm:$0xff]
    %v96 = vld [vmem:[#allocation2 + $0x1f8] sm:$0xff]
    %v97 = vld [vmem:[#allocation2 + $0x200] sm:$0xff]
    %v98 = vld [vmem:[#allocation2 + $0x208] sm:$0xff]
    %v99 = vld [vmem:[#allocation2 + $0x210] sm:$0xff]
    %v100 = vld [vmem:[#allocation2 + $0x218] sm:$0xff]
    %v101 = vld [vmem:[#allocation2 + $0x220] sm:$0xff]
    %v102 = vld [vmem:[#allocation2 + $0x228] sm:$0xff]
    %v103 = vld [vmem:[#allocation2 + $0x230] sm:$0xff]
    %v104 = vld [vmem:[#allocation2 + $0x238] sm:$0xff]
    %v105 = vld [vmem:[#allocation2 + $0x240] sm:$0xff]
    %v106 = vld [vmem:[#allocation2 + $0x248] sm:$0xff]
    %v107 = vld [vmem:[#allocation2 + $0x250] sm:$0xff]
    %v108 = vld [vmem:[#allocation2 + $0x258] sm:$0xff]
    %v109 = vld [vmem:[#allocation2 + $0x260] sm:$0xff]
    %v110 = vld [vmem:[#allocation2 + $0x268] sm:$0xff]
    %v111 = vld [vmem:[#allocation2 + $0x270] sm:$0xff]
    %v112 = vld [vmem:[#allocation2 + $0x278] sm:$0xff]
    %v113 = vld [vmem:[#allocation2 + $0x280] sm:$0xff]
    %v114 = vld [vmem:[#allocation2 + $0x288] sm:$0xff]
    %v115 = vld [vmem:[#allocation2 + $0x290] sm:$0xff]
    %v116 = vld [vmem:[#allocation2 + $0x298] sm:$0xff]
    %v117 = vld [vmem:[#allocation2 + $0x2a0] sm:$0xff]
    %v118 = vld [vmem:[#allocation2 + $0x2a8] sm:$0xff]
    %v119 = vld [vmem:[#allocation2 + $0x2b0] sm:$0xff]
    %v120 = vld [vmem:[#allocation2 + $0x2b8] sm:$0xff]
    %v121 = vld [vmem:[#allocation2 + $0x2c0] sm:$0xff]
    %v122 = vld [vmem:[#allocation2 + $0x2c8] sm:$0xff]
    %v123 = vld [vmem:[#allocation2 + $0x2d0] sm:$0xff]
    %v124 = vld [vmem:[#allocation2 + $0x2d8] sm:$0xff]
    %v125 = vld [vmem:[#allocation2 + $0x2e0] sm:$0xff]
    %v126 = vld [vmem:[#allocation2 + $0x2e8] sm:$0xff]
    %v127 = vld [vmem:[#allocation2 + $0x2f0] sm:$0xff]
    %v128 = vld [vmem:[#allocation2 + $0x2f8] sm:$0xff]
    %v129 = vld [vmem:[#allocation2 + $0x300] sm:$0xff]
    %v130 = vld [vmem:[#allocation2 + $0x308] sm:$0xff]
    %v131 = vld [vmem:[#allocation2 + $0x310] sm:$0xff]
    %v132 = vld [vmem:[#allocation2 + $0x318] sm:$0xff]
    %v133 = vld [vmem:[#allocation2 + $0x320] sm:$0xff]
    %v134 = vld [vmem:[#allocation2 + $0x328] sm:$0xff]
    %v135 = vld [vmem:[#allocation2 + $0x330] sm:$0xff]
    %v136 = vld [vmem:[#allocation2 + $0x338] sm:$0xff]
    %v137 = vld [vmem:[#allocation2 + $0x340] sm:$0xff]
    %v138 = vld [vmem:[#allocation2 + $0x348] sm:$0xff]
    %v139 = vld [vmem:[#allocation2 + $0x350] sm:$0xff]
    %v140 = vld [vmem:[#allocation2 + $0x358] sm:$0xff]
    %v141 = vld [vmem:[#allocation2 + $0x360] sm:$0xff]
    %v142 = vld [vmem:[#allocation2 + $0x368] sm:$0xff]
    %v143 = vld [vmem:[#allocation2 + $0x370] sm:$0xff]
    %v144 = vld [vmem:[#allocation2 + $0x378] sm:$0xff]
    %v145 = vld [vmem:[#allocation2 + $0x380] sm:$0xff]
    %v146 = vld [vmem:[#allocation2 + $0x388] sm:$0xff]
    %v147 = vld [vmem:[#allocation2 + $0x390] sm:$0xff]
    %v148 = vld [vmem:[#allocation2 + $0x398] sm:$0xff]
    %v149 = vld [vmem:[#allocation2 + $0x3a0] sm:$0xff]
    %v150 = vld [vmem:[#allocation2 + $0x3a8] sm:$0xff]
    %v151 = vld [vmem:[#allocation2 + $0x3b0] sm:$0xff]
    %v152 = vld [vmem:[#allocation2 + $0x3b8] sm:$0xff]
    %v153 = vld [vmem:[#allocation2 + $0x3c0] sm:$0xff]
    %v154 = vld [vmem:[#allocation2 + $0x3c8] sm:$0xff]
    %v155 = vld [vmem:[#allocation2 + $0x3d0] sm:$0xff]
    %v156 = vld [vmem:[#allocation2 + $0x3d8] sm:$0xff]
    %v157 = vld [vmem:[#allocation2 + $0x3e0] sm:$0xff]
    %v158 = vld [vmem:[#allocation2 + $0x3e8] sm:$0xff]
    %v159 = vld [vmem:[#allocation2 + $0x3f0] sm:$0xff]
    %v160 = vld [vmem:[#allocation2 + $0x3f8] sm:$0xff]
    %v162 = vunpack.c.l.b16 %v32
    %v163 = vunpack.c.h.b16 %v32
    %v164 = vpack.c.b16 %v162, %v162
    %v165 = vpack.c.b16 %v163, %v163
    %v296 = vunpack.c.l.b16 %v33
    %v297 = vunpack.c.h.b16 %v33
    %v298 = vunpack.c.l.b16 %v34
    %v299 = vunpack.c.h.b16 %v34
    %v300 = vunpack.c.l.b16 %v35
    %v301 = vunpack.c.h.b16 %v35
    %v302 = vunpack.c.l.b16 %v36
    %v303 = vunpack.c.h.b16 %v36
    %v304 = vunpack.c.l.b16 %v37
    %v305 = vunpack.c.h.b16 %v37
    %v306 = vunpack.c.l.b16 %v38
    %v307 = vunpack.c.h.b16 %v38
    %v308 = vunpack.c.l.b16 %v39
    %v309 = vunpack.c.h.b16 %v39
    %v310 = vunpack.c.l.b16 %v40
    %v311 = vunpack.c.h.b16 %v40
    %v312 = vunpack.c.l.b16 %v41
    %v313 = vunpack.c.h.b16 %v41
    %v314 = vunpack.c.l.b16 %v42
    %v315 = vunpack.c.h.b16 %v42
    %v316 = vunpack.c.l.b16 %v43
    %v317 = vunpack.c.h.b16 %v43
    %v318 = vunpack.c.l.b16 %v44
    %v319 = vunpack.c.h.b16 %v44
    %v320 = vunpack.c.l.b16 %v45
    %v321 = vunpack.c.h.b16 %v45
    %v322 = vunpack.c.l.b16 %v46
    %v323 = vunpack.c.h.b16 %v46
    %v324 = vunpack.c.l.b16 %v47
    %v325 = vunpack.c.h.b16 %v47
    %v326 = vunpack.c.l.b16 %v48
    %v327 = vunpack.c.h.b16 %v48
    %v328 = vunpack.c.l.b16 %v49
    %v329 = vunpack.c.h.b16 %v49
    %v330 = vunpack.c.l.b16 %v50
    %v331 = vunpack.c.h.b16 %v50
    %v332 = vunpack.c.l.b16 %v51
    %v333 = vunpack.c.h.b16 %v51
    %v334 = vunpack.c.l.b16 %v52
    %v335 = vunpack.c.h.b16 %v52
    %v336 = vunpack.c.l.b16 %v53
    %v337 = vunpack.c.h.b16 %v53
    %v338 = vunpack.c.l.b16 %v54
    %v339 = vunpack.c.h.b16 %v54
    %v340 = vunpack.c.l.b16 %v55
    %v341 = vunpack.c.h.b16 %v55
    %v342 = vunpack.c.l.b16 %v56
    %v343 = vunpack.c.h.b16 %v56
    %v344 = vunpack.c.l.b16 %v57
    %v345 = vunpack.c.h.b16 %v57
    %v346 = vunpack.c.l.b16 %v58
    %v347 = vunpack.c.h.b16 %v58
    %v348 = vunpack.c.l.b16 %v59
    %v349 = vunpack.c.h.b16 %v59
    %v350 = vunpack.c.l.b16 %v60
    %v351 = vunpack.c.h.b16 %v60
    %v352 = vunpack.c.l.b16 %v61
    %v353 = vunpack.c.h.b16 %v61
    %v354 = vunpack.c.l.b16 %v62
    %v355 = vunpack.c.h.b16 %v62
    %v356 = vunpack.c.l.b16 %v63
    %v357 = vunpack.c.h.b16 %v63
    %v358 = vunpack.c.l.b16 %v64
    %v359 = vunpack.c.h.b16 %v64
    %v360 = vunpack.c.l.b16 %v65
    %v361 = vunpack.c.h.b16 %v65
    %v362 = vunpack.c.l.b16 %v66
    %v363 = vunpack.c.h.b16 %v66
    %v364 = vunpack.c.l.b16 %v67
    %v365 = vunpack.c.h.b16 %v67
    %v366 = vunpack.c.l.b16 %v68
    %v367 = vunpack.c.h.b16 %v68
    %v368 = vunpack.c.l.b16 %v69
    %v369 = vunpack.c.h.b16 %v69
    %v370 = vunpack.c.l.b16 %v70
    %v371 = vunpack.c.h.b16 %v70
    %v372 = vunpack.c.l.b16 %v71
    %v373 = vunpack.c.h.b16 %v71
    %v374 = vunpack.c.l.b16 %v72
    %v375 = vunpack.c.h.b16 %v72
    %v376 = vunpack.c.l.b16 %v73
    %v377 = vunpack.c.h.b16 %v73
    %v378 = vunpack.c.l.b16 %v74
    %v379 = vunpack.c.h.b16 %v74
    %v380 = vunpack.c.l.b16 %v75
    %v381 = vunpack.c.h.b16 %v75
    %v382 = vunpack.c.l.b16 %v76
    %v383 = vunpack.c.h.b16 %v76
    %v384 = vunpack.c.l.b16 %v77
    %v385 = vunpack.c.h.b16 %v77
    %v386 = vunpack.c.l.b16 %v78
    %v387 = vunpack.c.h.b16 %v78
    %v388 = vunpack.c.l.b16 %v79
    %v389 = vunpack.c.h.b16 %v79
    %v390 = vunpack.c.l.b16 %v80
    %v391 = vunpack.c.h.b16 %v80
    %v392 = vunpack.c.l.b16 %v81
    %v393 = vunpack.c.h.b16 %v81
    %v394 = vunpack.c.l.b16 %v82
    %v395 = vunpack.c.h.b16 %v82
    %v396 = vunpack.c.l.b16 %v83
    %v397 = vunpack.c.h.b16 %v83
    %v398 = vunpack.c.l.b16 %v84
    %v399 = vunpack.c.h.b16 %v84
    %v400 = vunpack.c.l.b16 %v85
    %v401 = vunpack.c.h.b16 %v85
    %v402 = vunpack.c.l.b16 %v86
    %v403 = vunpack.c.h.b16 %v86
    %v404 = vunpack.c.l.b16 %v87
    %v405 = vunpack.c.h.b16 %v87
    %v406 = vunpack.c.l.b16 %v88
    %v407 = vunpack.c.h.b16 %v88
    %v408 = vunpack.c.l.b16 %v89
    %v409 = vunpack.c.h.b16 %v89
    %v410 = vunpack.c.l.b16 %v90
    %v411 = vunpack.c.h.b16 %v90
    %v412 = vunpack.c.l.b16 %v91
    %v413 = vunpack.c.h.b16 %v91
    %v414 = vunpack.c.l.b16 %v92
    %v415 = vunpack.c.h.b16 %v92
    %v416 = vunpack.c.l.b16 %v93
    %v417 = vunpack.c.h.b16 %v93
    %v418 = vunpack.c.l.b16 %v94
    %v419 = vunpack.c.h.b16 %v94
    %v420 = vunpack.c.l.b16 %v95
    %v421 = vunpack.c.h.b16 %v95
    %v422 = vunpack.c.l.b16 %v96
    %v423 = vunpack.c.h.b16 %v96
    %v424 = vunpack.c.l.b16 %v97
    %v425 = vunpack.c.h.b16 %v97
    %v426 = vunpack.c.l.b16 %v98
    %v427 = vunpack.c.h.b16 %v98
    %v428 = vunpack.c.l.b16 %v99
    %v429 = vunpack.c.h.b16 %v99
    %v430 = vunpack.c.l.b16 %v100
    %v431 = vunpack.c.h.b16 %v100
    %v432 = vunpack.c.l.b16 %v101
    %v433 = vunpack.c.h.b16 %v101
    %v434 = vunpack.c.l.b16 %v102
    %v435 = vunpack.c.h.b16 %v102
    %v436 = vunpack.c.l.b16 %v103
    %v437 = vunpack.c.h.b16 %v103
    %v438 = vunpack.c.l.b16 %v104
    %v439 = vunpack.c.h.b16 %v104
    %v440 = vunpack.c.l.b16 %v105
    %v441 = vunpack.c.h.b16 %v105
    %v442 = vunpack.c.l.b16 %v106
    %v443 = vunpack.c.h.b16 %v106
    %v444 = vunpack.c.l.b16 %v107
    %v445 = vunpack.c.h.b16 %v107
    %v446 = vunpack.c.l.b16 %v108
    %v447 = vunpack.c.h.b16 %v108
    %v448 = vunpack.c.l.b16 %v109
    %v449 = vunpack.c.h.b16 %v109
    %v450 = vunpack.c.l.b16 %v110
    %v451 = vunpack.c.h.b16 %v110
    %v452 = vunpack.c.l.b16 %v111
    %v453 = vunpack.c.h.b16 %v111
    %v454 = vunpack.c.l.b16 %v112
    %v455 = vunpack.c.h.b16 %v112
    %v456 = vunpack.c.l.b16 %v113
    %v457 = vunpack.c.h.b16 %v113
    %v458 = vunpack.c.l.b16 %v114
    %v459 = vunpack.c.h.b16 %v114
    %v460 = vunpack.c.l.b16 %v115
    %v461 = vunpack.c.h.b16 %v115
    %v462 = vunpack.c.l.b16 %v116
    %v463 = vunpack.c.h.b16 %v116
    %v464 = vunpack.c.l.b16 %v117
    %v465 = vunpack.c.h.b16 %v117
    %v466 = vunpack.c.l.b16 %v118
    %v467 = vunpack.c.h.b16 %v118
    %v468 = vunpack.c.l.b16 %v119
    %v469 = vunpack.c.h.b16 %v119
    %v470 = vunpack.c.l.b16 %v120
    %v471 = vunpack.c.h.b16 %v120
    %v472 = vunpack.c.l.b16 %v121
    %v473 = vunpack.c.h.b16 %v121
    %v474 = vunpack.c.l.b16 %v122
    %v475 = vunpack.c.h.b16 %v122
    %v476 = vunpack.c.l.b16 %v123
    %v477 = vunpack.c.h.b16 %v123
    %v478 = vunpack.c.l.b16 %v124
    %v479 = vunpack.c.h.b16 %v124
    %v480 = vunpack.c.l.b16 %v125
    %v481 = vunpack.c.h.b16 %v125
    %v482 = vunpack.c.l.b16 %v126
    %v483 = vunpack.c.h.b16 %v126
    %v484 = vunpack.c.l.b16 %v127
    %v485 = vunpack.c.h.b16 %v127
    %v486 = vunpack.c.l.b16 %v128
    %v487 = vunpack.c.h.b16 %v128
    %v488 = vunpack.c.l.b16 %v129
    %v489 = vunpack.c.h.b16 %v129
    %v490 = vunpack.c.l.b16 %v130
    %v491 = vunpack.c.h.b16 %v130
    %v492 = vunpack.c.l.b16 %v131
    %v493 = vunpack.c.h.b16 %v131
    %v494 = vunpack.c.l.b16 %v132
    %v495 = vunpack.c.h.b16 %v132
    %v496 = vunpack.c.l.b16 %v133
    %v497 = vunpack.c.h.b16 %v133
    %v498 = vunpack.c.l.b16 %v134
    %v499 = vunpack.c.h.b16 %v134
    %v500 = vunpack.c.l.b16 %v135
    %v501 = vunpack.c.h.b16 %v135
    %v502 = vunpack.c.l.b16 %v136
    %v503 = vunpack.c.h.b16 %v136
    %v504 = vunpack.c.l.b16 %v137
    %v505 = vunpack.c.h.b16 %v137
    %v506 = vunpack.c.l.b16 %v138
    %v507 = vunpack.c.h.b16 %v138
    %v508 = vunpack.c.l.b16 %v139
    %v509 = vunpack.c.h.b16 %v139
    %v510 = vunpack.c.l.b16 %v140
    %v511 = vunpack.c.h.b16 %v140
    %v512 = vunpack.c.l.b16 %v141
    %v513 = vunpack.c.h.b16 %v141
    %v514 = vunpack.c.l.b16 %v142
    %v515 = vunpack.c.h.b16 %v142
    %v516 = vunpack.c.l.b16 %v143
    %v517 = vunpack.c.h.b16 %v143
    %v518 = vunpack.c.l.b16 %v144
    %v519 = vunpack.c.h.b16 %v144
    %v520 = vunpack.c.l.b16 %v145
    %v521 = vunpack.c.h.b16 %v145
    %v522 = vunpack.c.l.b16 %v146
    %v523 = vunpack.c.h.b16 %v146
    %v524 = vunpack.c.l.b16 %v147
    %v525 = vunpack.c.h.b16 %v147
    %v526 = vunpack.c.l.b16 %v148
    %v527 = vunpack.c.h.b16 %v148
    %v528 = vunpack.c.l.b16 %v149
    %v529 = vunpack.c.h.b16 %v149
    %v530 = vunpack.c.l.b16 %v150
    %v531 = vunpack.c.h.b16 %v150
    %v532 = vunpack.c.l.b16 %v151
    %v533 = vunpack.c.h.b16 %v151
    %v534 = vunpack.c.l.b16 %v152
    %v535 = vunpack.c.h.b16 %v152
    %v536 = vunpack.c.l.b16 %v153
    %v537 = vunpack.c.h.b16 %v153
    %v538 = vunpack.c.l.b16 %v154
    %v539 = vunpack.c.h.b16 %v154
    %v540 = vunpack.c.l.b16 %v155
    %v541 = vunpack.c.h.b16 %v155
    %v542 = vunpack.c.l.b16 %v156
    %v543 = vunpack.c.h.b16 %v156
    %v544 = vunpack.c.l.b16 %v157
    %v545 = vunpack.c.h.b16 %v157
    %v546 = vunpack.c.l.b16 %v158
    %v547 = vunpack.c.h.b16 %v158
    %v548 = vunpack.c.l.b16 %v159
    %v549 = vunpack.c.h.b16 %v159
    %v550 = vunpack.c.l.b16 %v160
    %v551 = vunpack.c.h.b16 %v160
    %v552 = vpack.c.b16 %v298, %v296
    %v553 = vpack.c.b16 %v299, %v297
    %v554 = vpack.c.b16 %v302, %v300
    %v555 = vpack.c.b16 %v303, %v301
    %v556 = vpack.c.b16 %v306, %v304
    %v557 = vpack.c.b16 %v307, %v305
    %v558 = vpack.c.b16 %v310, %v308
    %v559 = vpack.c.b16 %v311, %v309
    %v560 = vpack.c.b16 %v314, %v312
    %v561 = vpack.c.b16 %v315, %v313
    %v562 = vpack.c.b16 %v318, %v316
    %v563 = vpack.c.b16 %v319, %v317
    %v564 = vpack.c.b16 %v322, %v320
    %v565 = vpack.c.b16 %v323, %v321
    %v566 = vpack.c.b16 %v326, %v324
    %v567 = vpack.c.b16 %v327, %v325
    %v568 = vpack.c.b16 %v330, %v328
    %v569 = vpack.c.b16 %v331, %v329
    %v570 = vpack.c.b16 %v334, %v332
    %v571 = vpack.c.b16 %v335, %v333
    %v572 = vpack.c.b16 %v338, %v336
    %v573 = vpack.c.b16 %v339, %v337
    %v574 = vpack.c.b16 %v342, %v340
    %v575 = vpack.c.b16 %v343, %v341
    %v576 = vpack.c.b16 %v346, %v344
    %v577 = vpack.c.b16 %v347, %v345
    %v578 = vpack.c.b16 %v350, %v348
    %v579 = vpack.c.b16 %v351, %v349
    %v580 = vpack.c.b16 %v354, %v352
    %v581 = vpack.c.b16 %v355, %v353
    %v582 = vpack.c.b16 %v358, %v356
    %v583 = vpack.c.b16 %v359, %v357
    %v584 = vpack.c.b16 %v362, %v360
    %v585 = vpack.c.b16 %v363, %v361
    %v586 = vpack.c.b16 %v366, %v364
    %v587 = vpack.c.b16 %v367, %v365
    %v588 = vpack.c.b16 %v370, %v368
    %v589 = vpack.c.b16 %v371, %v369
    %v590 = vpack.c.b16 %v374, %v372
    %v591 = vpack.c.b16 %v375, %v373
    %v592 = vpack.c.b16 %v378, %v376
    %v593 = vpack.c.b16 %v379, %v377
    %v594 = vpack.c.b16 %v382, %v380
    %v595 = vpack.c.b16 %v383, %v381
    %v596 = vpack.c.b16 %v386, %v384
    %v597 = vpack.c.b16 %v387, %v385
    %v598 = vpack.c.b16 %v390, %v388
    %v599 = vpack.c.b16 %v391, %v389
    %v600 = vpack.c.b16 %v394, %v392
    %v601 = vpack.c.b16 %v395, %v393
    %v602 = vpack.c.b16 %v398, %v396
    %v603 = vpack.c.b16 %v399, %v397
    %v604 = vpack.c.b16 %v402, %v400
    %v605 = vpack.c.b16 %v403, %v401
    %v606 = vpack.c.b16 %v406, %v404
    %v607 = vpack.c.b16 %v407, %v405
    %v608 = vpack.c.b16 %v410, %v408
    %v609 = vpack.c.b16 %v411, %v409
    %v610 = vpack.c.b16 %v414, %v412
    %v611 = vpack.c.b16 %v415, %v413
    %v612 = vpack.c.b16 %v418, %v416
    %v613 = vpack.c.b16 %v419, %v417
    %v614 = vpack.c.b16 %v422, %v420
    %v615 = vpack.c.b16 %v423, %v421
    %v616 = vpack.c.b16 %v426, %v424
    %v617 = vpack.c.b16 %v427, %v425
    %v618 = vpack.c.b16 %v430, %v428
    %v619 = vpack.c.b16 %v431, %v429
    %v620 = vpack.c.b16 %v434, %v432
    %v621 = vpack.c.b16 %v435, %v433
    %v622 = vpack.c.b16 %v438, %v436
    %v623 = vpack.c.b16 %v439, %v437
    %v624 = vpack.c.b16 %v442, %v440
    %v625 = vpack.c.b16 %v443, %v441
    %v626 = vpack.c.b16 %v446, %v444
    %v627 = vpack.c.b16 %v447, %v445
    %v628 = vpack.c.b16 %v450, %v448
    %v629 = vpack.c.b16 %v451, %v449
    %v630 = vpack.c.b16 %v454, %v452
    %v631 = vpack.c.b16 %v455, %v453
    %v632 = vpack.c.b16 %v458, %v456
    %v633 = vpack.c.b16 %v459, %v457
    %v634 = vpack.c.b16 %v462, %v460
    %v635 = vpack.c.b16 %v463, %v461
    %v636 = vpack.c.b16 %v466, %v464
    %v637 = vpack.c.b16 %v467, %v465
    %v638 = vpack.c.b16 %v470, %v468
    %v639 = vpack.c.b16 %v471, %v469
    %v640 = vpack.c.b16 %v474, %v472
    %v641 = vpack.c.b16 %v475, %v473
    %v642 = vpack.c.b16 %v478, %v476
    %v643 = vpack.c.b16 %v479, %v477
    %v644 = vpack.c.b16 %v482, %v480
    %v645 = vpack.c.b16 %v483, %v481
    %v646 = vpack.c.b16 %v486, %v484
    %v647 = vpack.c.b16 %v487, %v485
    %v648 = vpack.c.b16 %v490, %v488
    %v649 = vpack.c.b16 %v491, %v489
    %v650 = vpack.c.b16 %v494, %v492
    %v651 = vpack.c.b16 %v495, %v493
    %v652 = vpack.c.b16 %v498, %v496
    %v653 = vpack.c.b16 %v499, %v497
    %v654 = vpack.c.b16 %v502, %v500
    %v655 = vpack.c.b16 %v503, %v501
    %v656 = vpack.c.b16 %v506, %v504
    %v657 = vpack.c.b16 %v507, %v505
    %v658 = vpack.c.b16 %v510, %v508
    %v659 = vpack.c.b16 %v511, %v509
    %v660 = vpack.c.b16 %v514, %v512
    %v661 = vpack.c.b16 %v515, %v513
    %v662 = vpack.c.b16 %v518, %v516
    %v663 = vpack.c.b16 %v519, %v517
    %v664 = vpack.c.b16 %v522, %v520
    %v665 = vpack.c.b16 %v523, %v521
    %v666 = vpack.c.b16 %v526, %v524
    %v667 = vpack.c.b16 %v527, %v525
    %v668 = vpack.c.b16 %v530, %v528
    %v669 = vpack.c.b16 %v531, %v529
    %v670 = vpack.c.b16 %v534, %v532
    %v671 = vpack.c.b16 %v535, %v533
    %v672 = vpack.c.b16 %v538, %v536
    %v673 = vpack.c.b16 %v539, %v537
    %v674 = vpack.c.b16 %v542, %v540
    %v675 = vpack.c.b16 %v543, %v541
    %v676 = vpack.c.b16 %v546, %v544
    %v677 = vpack.c.b16 %v547, %v545
    %v678 = vpack.c.b16 %v550, %v548
    %v679 = vpack.c.b16 %v551, %v549
    %808 = vmatprep.subr.bf16.mxu0 %v553
    %809 = vmatpush1.bf16.xpose.msra.mxu0 %v552
    %810 = vmatprep.subr.bf16.mxu0 %v555
    %811 = vmatpush1.bf16.xpose.msra.mxu0 %v554
    %812 = vmatprep.subr.bf16.mxu0 %v557
    %813 = vmatpush1.bf16.xpose.msra.mxu0 %v556
    %814 = vmatprep.subr.bf16.mxu0 %v559
    %815 = vmatpush1.bf16.xpose.msra.mxu0 %v558
    %816 = vmatprep.subr.bf16.mxu0 %v561
    %817 = vmatpush1.bf16.xpose.msra.mxu0 %v560
    %818 = vmatprep.subr.bf16.mxu0 %v563
    %819 = vmatpush1.bf16.xpose.msra.mxu0 %v562
    %820 = vmatprep.subr.bf16.mxu0 %v565
    %821 = vmatpush1.bf16.xpose.msra.mxu0 %v564
    %822 = vmatprep.subr.bf16.mxu0 %v567
    %823 = vmatpush1.bf16.xpose.msra.mxu0 %v566
    %824 = vmatprep.subr.bf16.mxu0 %v569
    %825 = vmatpush1.bf16.xpose.msra.mxu0 %v568
    %826 = vmatprep.subr.bf16.mxu0 %v571
    %827 = vmatpush1.bf16.xpose.msra.mxu0 %v570
    %828 = vmatprep.subr.bf16.mxu0 %v573
    %829 = vmatpush1.bf16.xpose.msra.mxu0 %v572
    %830 = vmatprep.subr.bf16.mxu0 %v575
    %831 = vmatpush1.bf16.xpose.msra.mxu0 %v574
    %832 = vmatprep.subr.bf16.mxu0 %v577
    %833 = vmatpush1.bf16.xpose.msra.mxu0 %v576
    %834 = vmatprep.subr.bf16.mxu0 %v579
    %835 = vmatpush1.bf16.xpose.msra.mxu0 %v578
    %836 = vmatprep.subr.bf16.mxu0 %v581
    %837 = vmatpush1.bf16.xpose.msra.mxu0 %v580
    %838 = vmatprep.subr.bf16.mxu0 %v583
    %839 = vmatpush1.bf16.xpose.msra.mxu0 %v582
    %840 = vmatprep.mubr.bf16.mxu0 %v165
    %841 = vmatmul.mubr.bf16.gmra.mrb[0].mxu0 %v164
    %v842 = vpop.f32.mrb[0].mxu0
    %v843 = vadd.f32 0.0, %v842
    %v844 = vpop.f32.mrb[0].mxu0
    %v845 = vadd.f32 0.0, %v844
    %v846 = vpop.f32.mrb[0].mxu0
    %v847 = vpop.f32.mrb[0].mxu0
    %848 = vdwg.mxu0
    %849 = vmatprep.subr.bf16.mxu0 %v585
    %850 = vmatpush1.bf16.xpose.msra.mxu0 %v584
    %851 = vmatprep.subr.bf16.mxu0 %v587
    %852 = vmatpush1.bf16.xpose.msra.mxu0 %v586
    %853 = vmatprep.subr.bf16.mxu0 %v589
    %854 = vmatpush1.bf16.xpose.msra.mxu0 %v588
    %855 = vmatprep.subr.bf16.mxu0 %v591
    %856 = vmatpush1.bf16.xpose.msra.mxu0 %v590
    %857 = vmatprep.subr.bf16.mxu0 %v593
    %858 = vmatpush1.bf16.xpose.msra.mxu0 %v592
    %859 = vmatprep.subr.bf16.mxu0 %v595
    %860 = vmatpush1.bf16.xpose.msra.mxu0 %v594
    %861 = vmatprep.subr.bf16.mxu0 %v597
    %862 = vmatpush1.bf16.xpose.msra.mxu0 %v596
    %863 = vmatprep.subr.bf16.mxu0 %v599
    %864 = vmatpush1.bf16.xpose.msra.mxu0 %v598
    %865 = vmatprep.subr.bf16.mxu0 %v601
    %866 = vmatpush1.bf16.xpose.msra.mxu0 %v600
    %867 = vmatprep.subr.bf16.mxu0 %v603
    %868 = vmatpush1.bf16.xpose.msra.mxu0 %v602
    %869 = vmatprep.subr.bf16.mxu0 %v605
    %870 = vmatpush1.bf16.xpose.msra.mxu0 %v604
    %871 = vmatprep.subr.bf16.mxu0 %v607
    %872 = vmatpush1.bf16.xpose.msra.mxu0 %v606
    %873 = vmatprep.subr.bf16.mxu0 %v609
    %874 = vmatpush1.bf16.xpose.msra.mxu0 %v608
    %875 = vmatprep.subr.bf16.mxu0 %v611
    %876 = vmatpush1.bf16.xpose.msra.mxu0 %v610
    %877 = vmatprep.subr.bf16.mxu0 %v613
    %878 = vmatpush1.bf16.xpose.msra.mxu0 %v612
    %879 = vmatprep.subr.bf16.mxu0 %v615
    %880 = vmatpush1.bf16.xpose.msra.mxu0 %v614
    %881 = vmatprep.mubr.bf16.mxu0 %v165
    %882 = vmatmul.mubr.bf16.gmra.mrb[0].mxu0 %v164
    %v883 = vpop.f32.mrb[0].mxu0
    %v884 = vadd.f32 0.0, %v883
    %v885 = vpop.f32.mrb[0].mxu0
    %v886 = vadd.f32 0.0, %v885
    %v887 = vpop.f32.mrb[0].mxu0
    %v888 = vpop.f32.mrb[0].mxu0
    %889 = vdwg.mxu0
    %890 = vmatprep.subr.bf16.mxu0 %v617
    %891 = vmatpush1.bf16.xpose.msra.mxu0 %v616
    %892 = vmatprep.subr.bf16.mxu0 %v619
    %893 = vmatpush1.bf16.xpose.msra.mxu0 %v618
    %894 = vmatprep.subr.bf16.mxu0 %v621
    %895 = vmatpush1.bf16.xpose.msra.mxu0 %v620
    %896 = vmatprep.subr.bf16.mxu0 %v623
    %897 = vmatpush1.bf16.xpose.msra.mxu0 %v622
    %898 = vmatprep.subr.bf16.mxu0 %v625
    %899 = vmatpush1.bf16.xpose.msra.mxu0 %v624
    %900 = vmatprep.subr.bf16.mxu0 %v627
    %901 = vmatpush1.bf16.xpose.msra.mxu0 %v626
    %902 = vmatprep.subr.bf16.mxu0 %v629
    %903 = vmatpush1.bf16.xpose.msra.mxu0 %v628
    %904 = vmatprep.subr.bf16.mxu0 %v631
    %905 = vmatpush1.bf16.xpose.msra.mxu0 %v630
    %906 = vmatprep.subr.bf16.mxu0 %v633
    %907 = vmatpush1.bf16.xpose.msra.mxu0 %v632
    %908 = vmatprep.subr.bf16.mxu0 %v635
    %909 = vmatpush1.bf16.xpose.msra.mxu0 %v634
    %910 = vmatprep.subr.bf16.mxu0 %v637
    %911 = vmatpush1.bf16.xpose.msra.mxu0 %v636
    %912 = vmatprep.subr.bf16.mxu0 %v639
    %913 = vmatpush1.bf16.xpose.msra.mxu0 %v638
    %914 = vmatprep.subr.bf16.mxu0 %v641
    %915 = vmatpush1.bf16.xpose.msra.mxu0 %v640
    %916 = vmatprep.subr.bf16.mxu0 %v643
    %917 = vmatpush1.bf16.xpose.msra.mxu0 %v642
    %918 = vmatprep.subr.bf16.mxu0 %v645
    %919 = vmatpush1.bf16.xpose.msra.mxu0 %v644
    %920 = vmatprep.subr.bf16.mxu0 %v647
    %921 = vmatpush1.bf16.xpose.msra.mxu0 %v646
    %922 = vmatprep.mubr.bf16.mxu0 %v165
    %923 = vmatmul.mubr.bf16.gmra.mrb[0].mxu0 %v164
    %v924 = vpop.f32.mrb[0].mxu0
    %v925 = vadd.f32 0.0, %v924
    %v926 = vpop.f32.mrb[0].mxu0
    %v927 = vadd.f32 0.0, %v926
    %v928 = vpop.f32.mrb[0].mxu0
    %v929 = vpop.f32.mrb[0].mxu0
    %930 = vdwg.mxu0
    %931 = vmatprep.subr.bf16.mxu0 %v649
    %932 = vmatpush1.bf16.xpose.msra.mxu0 %v648
    %933 = vmatprep.subr.bf16.mxu0 %v651
    %934 = vmatpush1.bf16.xpose.msra.mxu0 %v650
    %935 = vmatprep.subr.bf16.mxu0 %v653
    %936 = vmatpush1.bf16.xpose.msra.mxu0 %v652
    %937 = vmatprep.subr.bf16.mxu0 %v655
    %938 = vmatpush1.bf16.xpose.msra.mxu0 %v654
    %939 = vmatprep.subr.bf16.mxu0 %v657
    %940 = vmatpush1.bf16.xpose.msra.mxu0 %v656
    %941 = vmatprep.subr.bf16.mxu0 %v659
    %942 = vmatpush1.bf16.xpose.msra.mxu0 %v658
    %943 = vmatprep.subr.bf16.mxu0 %v661
    %944 = vmatpush1.bf16.xpose.msra.mxu0 %v660
    %945 = vmatprep.subr.bf16.mxu0 %v663
    %946 = vmatpush1.bf16.xpose.msra.mxu0 %v662
    %947 = vmatprep.subr.bf16.mxu0 %v665
    %948 = vmatpush1.bf16.xpose.msra.mxu0 %v664
    %949 = vmatprep.subr.bf16.mxu0 %v667
    %950 = vmatpush1.bf16.xpose.msra.mxu0 %v666
    %951 = vmatprep.subr.bf16.mxu0 %v669
    %952 = vmatpush1.bf16.xpose.msra.mxu0 %v668
    %953 = vmatprep.subr.bf16.mxu0 %v671
    %954 = vmatpush1.bf16.xpose.msra.mxu0 %v670
    %955 = vmatprep.subr.bf16.mxu0 %v673
    %956 = vmatpush1.bf16.xpose.msra.mxu0 %v672
    %957 = vmatprep.subr.bf16.mxu0 %v675
    %958 = vmatpush1.bf16.xpose.msra.mxu0 %v674
    %959 = vmatprep.subr.bf16.mxu0 %v677
    %960 = vmatpush1.bf16.xpose.msra.mxu0 %v676
    %961 = vmatprep.subr.bf16.mxu0 %v679
    %962 = vmatpush1.bf16.xpose.msra.mxu0 %v678
    %963 = vmatprep.mubr.bf16.mxu0 %v165
    %964 = vmatmul.mubr.bf16.gmra.mrb[0].mxu0 %v164
    %v965 = vpop.f32.mrb[0].mxu0
    %v966 = vadd.f32 0.0, %v965
    %v967 = vpop.f32.mrb[0].mxu0
    %v968 = vadd.f32 0.0, %v967
    %v969 = vpop.f32.mrb[0].mxu0
    %v970 = vpop.f32.mrb[0].mxu0
    %971 = vdwg.mxu0
    %v972 = vld [vmem:[%s2] sm:$0xff]
    %974 = vset.pattern.permute.xlu0 0
    %975 = vperm.xlu0 %974, %v972
    %v976 = vpop.permute.xlu0 %975
    %v978 = vmul.f32 %v843, %v976
    %v979 = vmul.f32 %v845, %v976
    %v980 = vmul.f32 %v884, %v976
    %v981 = vmul.f32 %v886, %v976
    %v982 = vmul.f32 %v925, %v976
    %v983 = vmul.f32 %v927, %v976
    %v984 = vmul.f32 %v966, %v976
    %v985 = vmul.f32 %v968, %v976
    %v986 = vld [vmem:[%s3] sm:$0xff]
    %v988 = vlaneseq
    %v989 = vshrl.u32 %v988, 7
    %v990 = vsub.s32 0, %v989
    %v991 = vrot.slane %v986, %v990
    %v992 = vlaneseq
    %v993 = vshrl.u32 %v992, 7
    %v994 = vsub.s32 1, %v993
    %v995 = vrot.slane %v986, %v994
    %v996 = vlaneseq
    %v997 = vshrl.u32 %v996, 7
    %v998 = vsub.s32 2, %v997
    %v999 = vrot.slane %v986, %v998
    %v1000 = vlaneseq
    %v1001 = vshrl.u32 %v1000, 7
    %v1002 = vsub.s32 3, %v1001
    %v1003 = vrot.slane %v986, %v1002
    %v1004 = vlaneseq
    %v1005 = vshrl.u32 %v1004, 7
    %v1006 = vsub.s32 4, %v1005
    %v1007 = vrot.slane %v986, %v1006
    %v1008 = vlaneseq
    %v1009 = vshrl.u32 %v1008, 7
    %v1010 = vsub.s32 5, %v1009
    %v1011 = vrot.slane %v986, %v1010
    %v1012 = vlaneseq
    %v1013 = vshrl.u32 %v1012, 7
    %v1014 = vsub.s32 6, %v1013
    %v1015 = vrot.slane %v986, %v1014
    %v1016 = vlaneseq
    %v1017 = vshrl.u32 %v1016, 7
    %v1018 = vsub.s32 7, %v1017
    %v1019 = vrot.slane %v986, %v1018
    %v1028 = vmul.f32 %v978, %v991
    %v1029 = vmul.f32 %v979, %v995
    %v1030 = vmul.f32 %v980, %v999
    %v1031 = vmul.f32 %v981, %v1003
    %v1032 = vmul.f32 %v982, %v1007
    %v1033 = vmul.f32 %v983, %v1011
    %v1034 = vmul.f32 %v984, %v1015
    %v1035 = vmul.f32 %v985, %v1019
    %1036 = vst [vmem:[#allocation5] sm:$0xff] %v1028
    %1037 = vst [vmem:[#allocation5 + $0x8] sm:$0xff] %v1029
    %1038 = vst [vmem:[#allocation5 + $0x10] sm:$0xff] %v1030
    %1039 = vst [vmem:[#allocation5 + $0x18] sm:$0xff] %v1031
    %1040 = vst [vmem:[#allocation5 + $0x20] sm:$0xff] %v1032
    %1041 = vst [vmem:[#allocation5 + $0x28] sm:$0xff] %v1033
    %1042 = vst [vmem:[#allocation5 + $0x30] sm:$0xff] %v1034
    %1043 = vst [vmem:[#allocation5 + $0x38] sm:$0xff] %v1035
    // Predicated region
    $region22: #{tpu_custom_call.1} parent=1 // pred_check
      _
    $region23: #{tpu_custom_call.1} parent=1 // pred_check_branch
      %1045 = sbr.rel (0) target = $region25
    $region24: #{tpu_custom_call.1} parent=1 // pred_region
      %s1047 = ssub.s32 1024, 1024
      %1048 = vsyncadd [#allocation4], %s1047
      %s1050 = sshll.u32 [#allocation5], 4
      %s1051 = int_to_ptr.vmem [resolvable:$true] %s1050
      %1053 = dma.vmem_to_hbm [thread:$0]  %s1051, 1024, %s4, [#allocation4]
    $region25: #{tpu_custom_call.1} parent=1 // pred_fallthru
      _
    // Predicated region
    $region26: #{tpu_custom_call.1} parent=1 // pred_check
      _
    $region27: #{tpu_custom_call.1} parent=1 // pred_check_branch
      %1055 = sbr.rel (0) target = $region29
    $region28: #{tpu_custom_call.1} parent=1 // pred_region
      %1056 = dma.done [#allocation4], 1024
    $region29: #{tpu_custom_call.1} parent=1 // pred_fallthru
      _
    %1057 = vsyncpa [#allocation3], 1
    %1058 = vsyncpa [#allocation4], 1

</llo_original>
